<compile_context>
chip_gen: v7x
topology: tpu7x:2x2x1
jax: 0.10.0
libtpu: 0.0.40
codegen_flags: <defaults>
</compile_context>

<pallas_src>
import jax
import jax.numpy as jnp
from jax import lax
from jax.experimental import pallas as pl
from jax.experimental.pallas import tpu as pltpu


def _bilinear_matrix(in_size: int, out_size: int) -> jnp.ndarray:
    """1-D bilinear interpolation operator, PyTorch align_corners=True."""
    if out_size == 1:
        pos = jnp.zeros((1,), jnp.float32)
    else:
        pos = jnp.arange(out_size, dtype=jnp.float32) * (in_size - 1) / (out_size - 1)
    i0 = jnp.clip(jnp.floor(pos), 0, in_size - 1)
    i1 = jnp.clip(i0 + 1, 0, in_size - 1)
    frac = pos - i0
    m0 = jax.nn.one_hot(i0.astype(jnp.int32), in_size, dtype=jnp.float32)
    m1 = jax.nn.one_hot(i1.astype(jnp.int32), in_size, dtype=jnp.float32)
    return (1.0 - frac)[:, None] * m0 + frac[:, None] * m1  # (out_size, in_size)


def _vmem_capacity_bytes() -> int:
    """Per-core VMEM capacity; conservative fallback if the query is unavailable."""
    try:
        return int(pltpu.get_tpu_info().vmem_capacity_bytes)
    except Exception:
        return 64 << 20  # assume the smallest (v7x per-TC) budget


def _pick_tile_rows(h2, w2, w1, c2, co, dsize, budget_bytes):
    """Largest H2-row tile with (8,128)-aligned blocks fitting the VMEM budget."""
    def step_bytes(th):
        tp = th * w2
        # double-buffered x2 / out / zh blocks + f32 epilogue scratch
        return 2 * dsize * (c2 * tp + co * tp + co * th * w1) + 4 * co * th * w2

    cands = [th for th in range(8, h2, 8) if h2 % th == 0 and (th * w2) % 128 == 0]
    cands.append(h2)  # whole image: block dims == full array dims (always legal)
    fitting = [th for th in cands if step_bytes(th) <= budget_bytes]
    if not fitting:
        smallest = min(cands)
        raise ValueError(
            f"no (8,128)-aligned H2 row tile fits VMEM: smallest tile (TH={smallest}) "
            f"needs {step_bytes(smallest)} B, budget is {budget_bytes} B")
    return max(fitting)


def up_block_forward(x1, x2, w_red, gamma, beta, run_mean, run_var,
                     eps=1e-5, tile_rows=None):
    """up_block forward: bilinear upsample x1 to x2's size (align_corners=True),
    channel-concat with x2, BatchNorm2d (inference), 1x1 conv (bias=False).
    NCHW in / NCHW out."""
    N, C1, H1, W1 = x1.shape
    N2, C2, H2, W2 = x2.shape
    assert N == N2
    Co = w_red.shape[0]
    assert w_red.shape[1] == C1 + C2

    cdtype = x2.dtype                       # compute dtype of the high-res branch
    dsize = jnp.dtype(cdtype).itemsize
    hp = lax.Precision.HIGHEST

    # ---- BatchNorm (inference) folded into the 1x1 reduction conv ----------
    scale = (gamma / jnp.sqrt(run_var + eps)).astype(jnp.float32)
    shift = (beta - run_mean * scale).astype(jnp.float32)
    w1f = w_red[:, :C1].astype(jnp.float32) * scale[None, :C1]            # (Co, C1)
    w2f = (w_red[:, C1:].astype(jnp.float32) * scale[None, C1:]).astype(cdtype)
    bias = (w_red.astype(jnp.float32) @ shift).reshape(Co, 1)             # (Co, 1)

    # ---- separable bilinear operators (align_corners=True) -----------------
    ah = _bilinear_matrix(H1, H2)                                         # (H2, H1)
    awt = _bilinear_matrix(W1, W2).T.astype(cdtype)                       # (W1, W2)

    # ---- x1 branch, low-res part (tiny wrapper-side XLA dots) --------------
    # 1x1 conv BEFORE the upsample (C1 -> Co at H1 x W1) and the H-stage of the
    # separable bilinear upsample at W1 resolution.  Hoisting the H-stage removes
    # the per-image scratch / t==0 dependency (both grid axes become 'parallel')
    # and every broadcast_to + batched dot_general from the kernel.
    z1 = jnp.einsum('oc,nchw->nohw', w1f, x1.astype(jnp.float32), precision=hp)
    zh = jnp.einsum('Hh,nchw->ncHw', ah, z1, precision=hp).astype(cdtype)  # (N,Co,H2,W1)

    # lane-dense channel-major view of x2 (free reshape, no transpose)
    x2p = x2.reshape(N, C2, H2 * W2)

    # ---- generation-aware VMEM limit and row-tile size ---------------------
    vmem_cap = _vmem_capacity_bytes()
    vmem_limit = int(min((vmem_cap * 3) // 4, 100 << 20))   # ~96 MiB v5e/v6e, 48 MiB v7x
    if tile_rows is None:
        TH = _pick_tile_rows(H2, W2, W1, C2, Co, dsize, int(vmem_limit * 0.7))
    else:
        TH = int(tile_rows)
    assert H2 % TH == 0
    T = H2 // TH
    TP = TH * W2
    assert T == 1 or (TP % 128 == 0 and TH % 8 == 0), \
        "row tile must give lane-dense (8,128)-aligned blocks"

    def kernel(zh_ref, x2_ref, awt_ref, w2_ref, b_ref, o_ref, up_ref):
        # x2 branch: folded-BN 1x1 conv + constant bias, one MXU matmul over the
        # whole flat (lane-dense) tile: (Co, C2) x (C2, TH*W2).
        y2 = jnp.dot(w2_ref[...], x2_ref[0],
                     preferred_element_type=jnp.float32) + b_ref[...]     # (Co, TP)

        # x1 branch: W-stage of the separable bilinear upsample for this row tile
        # as ONE 2-D MXU matmul with M = Co*TH (free sublane-merge reshape).
        zh2d = zh_ref[0].reshape(Co * TH, W1)
        up = jnp.dot(zh2d, awt_ref[...],
                     preferred_element_type=jnp.float32)                  # (Co*TH, W2)
        up_ref[...] = up.reshape(Co, TH, W2)

        # Fused epilogue (replaces the old repack pass + extra scratch): per row,
        # add the upsampled x1 row into the conv result and store straight into
        # the flat output block.  Static offsets; with W2 % 128 == 0 every slice
        # and store is whole-vreg and unmasked.
        for i in range(TH):
            o_ref[0, :, i * W2:(i + 1) * W2] = (
                y2[:, i * W2:(i + 1) * W2] + up_ref[:, i, :]).astype(o_ref.dtype)

    out_p = pl.pallas_call(
        kernel,
        out_shape=jax.ShapeDtypeStruct((N, Co, H2 * W2), cdtype),
        grid_spec=pltpu.PrefetchScalarGridSpec(
            num_scalar_prefetch=0,
            grid=(N, T),
            in_specs=[
                pl.BlockSpec((1, Co, TH, W1), lambda n, t: (n, 0, t, 0)),  # zh tile
                pl.BlockSpec((1, C2, TP), lambda n, t: (n, 0, t)),         # x2 tile
                pl.BlockSpec((W1, W2), lambda n, t: (0, 0)),               # Aw^T
                pl.BlockSpec((Co, C2), lambda n, t: (0, 0)),               # folded W2
                pl.BlockSpec((Co, 1), lambda n, t: (0, 0)),                # const bias
            ],
            out_specs=pl.BlockSpec((1, Co, TP), lambda n, t: (n, 0, t)),
            scratch_shapes=[
                pltpu.VMEM((Co, TH, W2), jnp.float32),   # per-tile upsample rows
            ],
        ),
        compiler_params=pltpu.CompilerParams(
            dimension_semantics=("parallel", "parallel"),
            vmem_limit_bytes=vmem_limit,
        ),
    )(zh, x2p, awt, w2f, bias)

    # (N, Co, H2*W2) -> NCHW is a free reshape.
    return out_p.reshape(N, Co, H2, W2)


if __name__ == "__main__":
    key = jax.random.PRNGKey(0)
    N, in_ch, out_ch = 2, 8, 4                       # up_block(in_ch=8, out_ch=4, 0, 0)
    H1 = W1 = 8                                      # low-res decoder feature (x1)
    H2 = W2 = 16                                     # skip-connection feature (x2)
    C = in_ch + out_ch

    k = jax.random.split(key, 7)
    x1 = jax.random.normal(k[0], (N, in_ch, H1, W1), jnp.float32)
    x2 = jax.random.normal(k[1], (N, out_ch, H2, W2), jnp.float32)
    w_red = 0.1 * jax.random.normal(k[2], (out_ch, C), jnp.float32)      # 1x1 conv weight
    gamma = 1.0 + 0.1 * jax.random.normal(k[3], (C,), jnp.float32)       # BN weight
    beta = 0.1 * jax.random.normal(k[4], (C,), jnp.float32)              # BN bias
    run_mean = 0.1 * jax.random.normal(k[5], (C,), jnp.float32)          # BN running_mean
    run_var = jnp.abs(jax.random.normal(k[6], (C,), jnp.float32)) + 0.5  # BN running_var

    # pure-JAX reference (literal interpolate -> concat -> BN -> 1x1 conv)
    ah = _bilinear_matrix(H1, H2)
    aw = _bilinear_matrix(W1, W2)
    x1_up = jnp.einsum('Hh,Ww,nchw->ncHW', ah, aw, x1, precision=lax.Precision.HIGHEST)
    feat = jnp.concatenate([x1_up, x2], axis=1)
    eps = 1e-5
    scale = gamma / jnp.sqrt(run_var + eps)
    shift = beta - run_mean * scale
    bn = feat * scale[None, :, None, None] + shift[None, :, None, None]
    ref = jnp.einsum('oc,nchw->nohw', w_red, bn, precision=lax.Precision.HIGHEST)

    # f32 run: explicit tile_rows=8 -> 2 row tiles per image, 128-lane output blocks.
    out = jax.block_until_ready(
        up_block_forward(x1, x2, w_red, gamma, beta, run_mean, run_var, tile_rows=8))
    assert out.shape == (N, out_ch, H2, W2)
    err = jnp.max(jnp.abs(out - ref))
    assert jnp.allclose(out, ref, atol=2e-4, rtol=2e-4), f"f32 max abs err {err}"

    # auto-tiled run (exercises the VMEM-budget tile selector; whole image per step).
    out_auto = jax.block_until_ready(
        up_block_forward(x1, x2, w_red, gamma, beta, run_mean, run_var))
    err_a = jnp.max(jnp.abs(out_auto - ref))
    assert jnp.allclose(out_auto, ref, atol=2e-4, rtol=2e-4), f"auto max abs err {err_a}"

    # bf16 run (halves HBM traffic; matmuls accumulate in f32).
    out_bf16 = jax.block_until_ready(
        up_block_forward(x1.astype(jnp.bfloat16), x2.astype(jnp.bfloat16),
                         w_red, gamma, beta, run_mean, run_var, tile_rows=8))
    assert out_bf16.dtype == jnp.bfloat16
    err_b = jnp.max(jnp.abs(out_bf16.astype(jnp.float32) - ref))
    assert jnp.allclose(out_bf16.astype(jnp.float32), ref, atol=1e-1, rtol=1e-1), \
        f"bf16 max abs err {err_b}"

    print("KERNEL_OK")
</pallas_src>

<mosaic_0001>
module attributes {stable_mosaic.version = 11 : i64} {
  func.func @kernel(%arg0: i32, %arg1: i32, %arg2: memref<1x4x8x8xf32, #tpu.memory_space<vmem>>, %arg3: memref<1x4x128xf32, #tpu.memory_space<vmem>>, %arg4: memref<8x16xf32, #tpu.memory_space<vmem>>, %arg5: memref<4x4xf32, #tpu.memory_space<vmem>>, %arg6: memref<4x1xf32, #tpu.memory_space<vmem>>, %arg7: memref<1x4x128xf32, #tpu.memory_space<vmem>>, %arg8: memref<4x8x16xf32, #tpu.memory_space<vmem>>) attributes {dimension_semantics = [#tpu.dimension_semantics<parallel>, #tpu.dimension_semantics<parallel>], iteration_bounds = array<i64: 2, 2>, scalar_prefetch = 0 : i64, scratch_operands = 1 : i64, tpu.core_type = #tpu.core_type<tc>, window_params = [{transform_indices = @transform_0, window_bounds = array<i64: 1, 4, 8, 8>}, {transform_indices = @transform_1, window_bounds = array<i64: 1, 4, 128>}, {pipeline_mode = #tpu.pipeline_mode<synchronous>, transform_indices = @transform_2, window_bounds = array<i64: 8, 16>}, {pipeline_mode = #tpu.pipeline_mode<synchronous>, transform_indices = @transform_3, window_bounds = array<i64: 4, 4>}, {pipeline_mode = #tpu.pipeline_mode<synchronous>, transform_indices = @transform_4, window_bounds = array<i64: 4, 1>}, {transform_indices = @transform_5, window_bounds = array<i64: 1, 4, 128>}]} {
    %c0 = arith.constant 0 : index
    %c0_0 = arith.constant 0 : index
    %0 = vector.load %arg5[%c0, %c0_0] : memref<4x4xf32, #tpu.memory_space<vmem>>, vector<4x4xf32>
    %c0_1 = arith.constant 0 : index
    %c0_2 = arith.constant 0 : index
    %c0_3 = arith.constant 0 : index
    %1 = vector.load %arg3[%c0_1, %c0_2, %c0_3] : memref<1x4x128xf32, #tpu.memory_space<vmem>>, vector<1x4x128xf32>
    %2 = vector.shape_cast %1 : vector<1x4x128xf32> to vector<4x128xf32>
    %cst = arith.constant dense<0.000000e+00> : vector<4x128xf32>
    %3 = tpu.matmul %0, %2, %cst {dimension_numbers = #tpu.dot_dimension_numbers<[1], [0], [0], [1], [0, 0, 1, 1], [], []>} : vector<4x4xf32>, vector<4x128xf32>, vector<4x128xf32> -> vector<4x128xf32>
    %c0_4 = arith.constant 0 : index
    %c0_5 = arith.constant 0 : index
    %4 = vector.load %arg6[%c0_4, %c0_5] : memref<4x1xf32, #tpu.memory_space<vmem>>, vector<4x1xf32>
    %5 = vector.broadcast %4 : vector<4x1xf32> to vector<4x128xf32>
    %6 = arith.addf %3, %5 : vector<4x128xf32>
    %c0_6 = arith.constant 0 : index
    %c0_7 = arith.constant 0 : index
    %c0_8 = arith.constant 0 : index
    %c0_9 = arith.constant 0 : index
    %7 = vector.load %arg2[%c0_6, %c0_7, %c0_8, %c0_9] : memref<1x4x8x8xf32, #tpu.memory_space<vmem>>, vector<1x4x8x8xf32>
    %8 = vector.shape_cast %7 : vector<1x4x8x8xf32> to vector<4x8x8xf32>
    %9 = vector.shape_cast %8 : vector<4x8x8xf32> to vector<32x8xf32>
    %c0_10 = arith.constant 0 : index
    %c0_11 = arith.constant 0 : index
    %10 = vector.load %arg4[%c0_10, %c0_11] : memref<8x16xf32, #tpu.memory_space<vmem>>, vector<8x16xf32>
    %cst_12 = arith.constant dense<0.000000e+00> : vector<32x16xf32>
    %11 = tpu.matmul %9, %10, %cst_12 {dimension_numbers = #tpu.dot_dimension_numbers<[1], [0], [0], [1], [0, 0, 1, 1], [], []>} : vector<32x8xf32>, vector<8x16xf32>, vector<32x16xf32> -> vector<32x16xf32>
    %12 = vector.shape_cast %11 : vector<32x16xf32> to vector<4x8x16xf32>
    %c0_13 = arith.constant 0 : index
    %c0_14 = arith.constant 0 : index
    %c0_15 = arith.constant 0 : index
    %13 = vector.load %arg8[%c0_13, %c0_14, %c0_15] : memref<4x8x16xf32, #tpu.memory_space<vmem>>, vector<4x8x16xf32>
    tpu.vector_store %arg8[%c0_13, %c0_14, %c0_15], %12 {strides = array<i32>} : memref<4x8x16xf32, #tpu.memory_space<vmem>>, vector<4x8x16xf32>,
    %14 = vector.extract_strided_slice %6 {offsets = [0, 0], sizes = [4, 16], strides = [1, 1]} : vector<4x128xf32> to vector<4x16xf32>
    %c0_16 = arith.constant 0 : index
    %c0_17 = arith.constant 0 : index
    %c0_18 = arith.constant 0 : index
    %15 = vector.load %arg8[%c0_16, %c0_17, %c0_18] : memref<4x8x16xf32, #tpu.memory_space<vmem>>, vector<4x1x16xf32>
    %16 = vector.shape_cast %15 : vector<4x1x16xf32> to vector<4x16xf32>
    %17 = arith.addf %14, %16 : vector<4x16xf32>
    %c0_19 = arith.constant 0 : index
    %c0_20 = arith.constant 0 : index
    %c0_21 = arith.constant 0 : index
    %18 = vector.load %arg7[%c0_19, %c0_20, %c0_21] : memref<1x4x128xf32, #tpu.memory_space<vmem>>, vector<1x4x16xf32>
    %19 = vector.shape_cast %18 : vector<1x4x16xf32> to vector<4x16xf32>
    %20 = vector.shape_cast %17 : vector<4x16xf32> to vector<1x4x16xf32>
    tpu.vector_store %arg7[%c0_19, %c0_20, %c0_21], %20 {strides = array<i32>} : memref<1x4x128xf32, #tpu.memory_space<vmem>>, vector<1x4x16xf32>,
    %21 = vector.extract_strided_slice %6 {offsets = [0, 16], sizes = [4, 16], strides = [1, 1]} : vector<4x128xf32> to vector<4x16xf32>
    %c0_22 = arith.constant 0 : index
    %c1 = arith.constant 1 : index
    %c0_23 = arith.constant 0 : index
    %22 = vector.load %arg8[%c0_22, %c1, %c0_23] : memref<4x8x16xf32, #tpu.memory_space<vmem>>, vector<4x1x16xf32>
    %23 = vector.shape_cast %22 : vector<4x1x16xf32> to vector<4x16xf32>
    %24 = arith.addf %21, %23 : vector<4x16xf32>
    %c0_24 = arith.constant 0 : index
    %c0_25 = arith.constant 0 : index
    %c16 = arith.constant 16 : index
    %25 = vector.load %arg7[%c0_24, %c0_25, %c16] : memref<1x4x128xf32, #tpu.memory_space<vmem>>, vector<1x4x16xf32>
    %26 = vector.shape_cast %25 : vector<1x4x16xf32> to vector<4x16xf32>
    %27 = vector.shape_cast %24 : vector<4x16xf32> to vector<1x4x16xf32>
    tpu.vector_store %arg7[%c0_24, %c0_25, %c16], %27 {strides = array<i32>} : memref<1x4x128xf32, #tpu.memory_space<vmem>>, vector<1x4x16xf32>,
    %28 = vector.extract_strided_slice %6 {offsets = [0, 32], sizes = [4, 16], strides = [1, 1]} : vector<4x128xf32> to vector<4x16xf32>
    %c0_26 = arith.constant 0 : index
    %c2 = arith.constant 2 : index
    %c0_27 = arith.constant 0 : index
    %29 = vector.load %arg8[%c0_26, %c2, %c0_27] : memref<4x8x16xf32, #tpu.memory_space<vmem>>, vector<4x1x16xf32>
    %30 = vector.shape_cast %29 : vector<4x1x16xf32> to vector<4x16xf32>
    %31 = arith.addf %28, %30 : vector<4x16xf32>
    %c0_28 = arith.constant 0 : index
    %c0_29 = arith.constant 0 : index
    %c32 = arith.constant 32 : index
    %32 = vector.load %arg7[%c0_28, %c0_29, %c32] : memref<1x4x128xf32, #tpu.memory_space<vmem>>, vector<1x4x16xf32>
    %33 = vector.shape_cast %32 : vector<1x4x16xf32> to vector<4x16xf32>
    %34 = vector.shape_cast %31 : vector<4x16xf32> to vector<1x4x16xf32>
    tpu.vector_store %arg7[%c0_28, %c0_29, %c32], %34 {strides = array<i32>} : memref<1x4x128xf32, #tpu.memory_space<vmem>>, vector<1x4x16xf32>,
    %35 = vector.extract_strided_slice %6 {offsets = [0, 48], sizes = [4, 16], strides = [1, 1]} : vector<4x128xf32> to vector<4x16xf32>
    %c0_30 = arith.constant 0 : index
    %c3 = arith.constant 3 : index
    %c0_31 = arith.constant 0 : index
    %36 = vector.load %arg8[%c0_30, %c3, %c0_31] : memref<4x8x16xf32, #tpu.memory_space<vmem>>, vector<4x1x16xf32>
    %37 = vector.shape_cast %36 : vector<4x1x16xf32> to vector<4x16xf32>
    %38 = arith.addf %35, %37 : vector<4x16xf32>
    %c0_32 = arith.constant 0 : index
    %c0_33 = arith.constant 0 : index
    %c48 = arith.constant 48 : index
    %39 = vector.load %arg7[%c0_32, %c0_33, %c48] : memref<1x4x128xf32, #tpu.memory_space<vmem>>, vector<1x4x16xf32>
    %40 = vector.shape_cast %39 : vector<1x4x16xf32> to vector<4x16xf32>
    %41 = vector.shape_cast %38 : vector<4x16xf32> to vector<1x4x16xf32>
    tpu.vector_store %arg7[%c0_32, %c0_33, %c48], %41 {strides = array<i32>} : memref<1x4x128xf32, #tpu.memory_space<vmem>>, vector<1x4x16xf32>,
    %42 = vector.extract_strided_slice %6 {offsets = [0, 64], sizes = [4, 16], strides = [1, 1]} : vector<4x128xf32> to vector<4x16xf32>
    %c0_34 = arith.constant 0 : index
    %c4 = arith.constant 4 : index
    %c0_35 = arith.constant 0 : index
    %43 = vector.load %arg8[%c0_34, %c4, %c0_35] : memref<4x8x16xf32, #tpu.memory_space<vmem>>, vector<4x1x16xf32>
    %44 = vector.shape_cast %43 : vector<4x1x16xf32> to vector<4x16xf32>
    %45 = arith.addf %42, %44 : vector<4x16xf32>
    %c0_36 = arith.constant 0 : index
    %c0_37 = arith.constant 0 : index
    %c64 = arith.constant 64 : index
    %46 = vector.load %arg7[%c0_36, %c0_37, %c64] : memref<1x4x128xf32, #tpu.memory_space<vmem>>, vector<1x4x16xf32>
    %47 = vector.shape_cast %46 : vector<1x4x16xf32> to vector<4x16xf32>
    %48 = vector.shape_cast %45 : vector<4x16xf32> to vector<1x4x16xf32>
    tpu.vector_store %arg7[%c0_36, %c0_37, %c64], %48 {strides = array<i32>} : memref<1x4x128xf32, #tpu.memory_space<vmem>>, vector<1x4x16xf32>,
    %49 = vector.extract_strided_slice %6 {offsets = [0, 80], sizes = [4, 16], strides = [1, 1]} : vector<4x128xf32> to vector<4x16xf32>
    %c0_38 = arith.constant 0 : index
    %c5 = arith.constant 5 : index
    %c0_39 = arith.constant 0 : index
    %50 = vector.load %arg8[%c0_38, %c5, %c0_39] : memref<4x8x16xf32, #tpu.memory_space<vmem>>, vector<4x1x16xf32>
    %51 = vector.shape_cast %50 : vector<4x1x16xf32> to vector<4x16xf32>
    %52 = arith.addf %49, %51 : vector<4x16xf32>
    %c0_40 = arith.constant 0 : index
    %c0_41 = arith.constant 0 : index
    %c80 = arith.constant 80 : index
    %53 = vector.load %arg7[%c0_40, %c0_41, %c80] : memref<1x4x128xf32, #tpu.memory_space<vmem>>, vector<1x4x16xf32>
    %54 = vector.shape_cast %53 : vector<1x4x16xf32> to vector<4x16xf32>
    %55 = vector.shape_cast %52 : vector<4x16xf32> to vector<1x4x16xf32>
    tpu.vector_store %arg7[%c0_40, %c0_41, %c80], %55 {strides = array<i32>} : memref<1x4x128xf32, #tpu.memory_space<vmem>>, vector<1x4x16xf32>,
    %56 = vector.extract_strided_slice %6 {offsets = [0, 96], sizes = [4, 16], strides = [1, 1]} : vector<4x128xf32> to vector<4x16xf32>
    %c0_42 = arith.constant 0 : index
    %c6 = arith.constant 6 : index
    %c0_43 = arith.constant 0 : index
    %57 = vector.load %arg8[%c0_42, %c6, %c0_43] : memref<4x8x16xf32, #tpu.memory_space<vmem>>, vector<4x1x16xf32>
    %58 = vector.shape_cast %57 : vector<4x1x16xf32> to vector<4x16xf32>
    %59 = arith.addf %56, %58 : vector<4x16xf32>
    %c0_44 = arith.constant 0 : index
    %c0_45 = arith.constant 0 : index
    %c96 = arith.constant 96 : index
    %60 = vector.load %arg7[%c0_44, %c0_45, %c96] : memref<1x4x128xf32, #tpu.memory_space<vmem>>, vector<1x4x16xf32>
    %61 = vector.shape_cast %60 : vector<1x4x16xf32> to vector<4x16xf32>
    %62 = vector.shape_cast %59 : vector<4x16xf32> to vector<1x4x16xf32>
    tpu.vector_store %arg7[%c0_44, %c0_45, %c96], %62 {strides = array<i32>} : memref<1x4x128xf32, #tpu.memory_space<vmem>>, vector<1x4x16xf32>,
    %63 = vector.extract_strided_slice %6 {offsets = [0, 112], sizes = [4, 16], strides = [1, 1]} : vector<4x128xf32> to vector<4x16xf32>
    %c0_46 = arith.constant 0 : index
    %c7 = arith.constant 7 : index
    %c0_47 = arith.constant 0 : index
    %64 = vector.load %arg8[%c0_46, %c7, %c0_47] : memref<4x8x16xf32, #tpu.memory_space<vmem>>, vector<4x1x16xf32>
    %65 = vector.shape_cast %64 : vector<4x1x16xf32> to vector<4x16xf32>
    %66 = arith.addf %63, %65 : vector<4x16xf32>
    %c0_48 = arith.constant 0 : index
    %c0_49 = arith.constant 0 : index
    %c112 = arith.constant 112 : index
    %67 = vector.load %arg7[%c0_48, %c0_49, %c112] : memref<1x4x128xf32, #tpu.memory_space<vmem>>, vector<1x4x16xf32>
    %68 = vector.shape_cast %67 : vector<1x4x16xf32> to vector<4x16xf32>
    %69 = vector.shape_cast %66 : vector<4x16xf32> to vector<1x4x16xf32>
    tpu.vector_store %arg7[%c0_48, %c0_49, %c112], %69 {strides = array<i32>} : memref<1x4x128xf32, #tpu.memory_space<vmem>>, vector<1x4x16xf32>,
    return
  }
  func.func @transform_0(%arg0: i32, %arg1: i32) -> (i32, i32, i32, i32) {
    %c0_i32 = arith.constant 0 : i32
    %c0_i32_0 = arith.constant 0 : i32
    %c0_i32_1 = arith.constant 0 : i32
    return %arg0, %c0_i32, %arg1, %c0_i32_0 : i32, i32, i32, i32
  }
  func.func @transform_1(%arg0: i32, %arg1: i32) -> (i32, i32, i32) {
    %c0_i32 = arith.constant 0 : i32
    %c0_i32_0 = arith.constant 0 : i32
    return %arg0, %c0_i32, %arg1 : i32, i32, i32
  }
  func.func @transform_2(%arg0: i32, %arg1: i32) -> (i32, i32) {
    %c0_i32 = arith.constant 0 : i32
    %c0_i32_0 = arith.constant 0 : i32
    %c0_i32_1 = arith.constant 0 : i32
    return %c0_i32, %c0_i32_0 : i32, i32
  }
  func.func @transform_3(%arg0: i32, %arg1: i32) -> (i32, i32) {
    %c0_i32 = arith.constant 0 : i32
    %c0_i32_0 = arith.constant 0 : i32
    %c0_i32_1 = arith.constant 0 : i32
    return %c0_i32, %c0_i32_0 : i32, i32
  }
  func.func @transform_4(%arg0: i32, %arg1: i32) -> (i32, i32) {
    %c0_i32 = arith.constant 0 : i32
    %c0_i32_0 = arith.constant 0 : i32
    %c0_i32_1 = arith.constant 0 : i32
    return %c0_i32, %c0_i32_0 : i32, i32
  }
  func.func @transform_5(%arg0: i32, %arg1: i32) -> (i32, i32, i32) {
    %c0_i32 = arith.constant 0 : i32
    %c0_i32_0 = arith.constant 0 : i32
    return %arg0, %c0_i32, %arg1 : i32, i32, i32
  }
}

</mosaic_0001>

<llo_original>
// kernel: tpu_custom_call.1
$region0: #{tpu_custom_call.1}
  #allocation0 [shape = 'u32[]', space=smem, size = 0x4, offset = 0x4, fixed_abs, tag = 'smem constant byte address 0x4 - core index']
  #allocation1 [shape = 'u32[144,128]{1,0:T(1,128)}', space=vmem, size = 0x12000, scoped, tag = 'internal scratch']
  #allocation2 [shape = 'f32[4,8,16]{2,1,0:T(8,128)}', space=vmem, size = 0x4000, scoped, tag = 'scratch operand']
  %s0 = inlined_call_operand.vmem [shape: f32[2,4,16,8], index: 0, kind: input, shape index: {}]
  %s1 = inlined_call_operand.vmem [shape: f32[2,4,256], index: 1, kind: input, shape index: {}]
  %s2 = inlined_call_operand.vmem [shape: f32[8,16], index: 2, kind: input, shape index: {}]
  %s3 = inlined_call_operand.vmem [shape: f32[4,4], index: 3, kind: input, shape index: {}]
  %s4 = inlined_call_operand.vmem [shape: f32[4,1], index: 4, kind: input, shape index: {}]
  %s5 = inlined_call_operand.hbm [shape: f32[2,4,256], index: 5, kind: output, shape index: {}]
  %s6 = sld [smem:[#allocation0]]
  $region91: #{tpu_custom_call.1} parent=0
    _
  %s8 = ssub.s32 1, %s6
  %s9 = scalar_select 0, %s8, %s6
  $region1: #{tpu_custom_call.1} parent=0
    #allocation3 [shape = 'u8[32768]{0}', space=vmem, size = 0x8000, scoped, tag = 'input window, operand 0']
    #allocation4 [shape = 'u8[4096]{0}', space=vmem, size = 0x1000, scoped, tag = 'output window, operand 0']
    #allocation5 [shape = 's32[2]{0}', space=sflag, size = 0x8, scoped, tag = 'scoped memory for tpu_custom_call.1']
    %10 = vsyncpa [#allocation5], 0
    %s11 = scalar_lea.sflag [#allocation5], 1
    %12 = vsyncpa %s11, 0
    loop: start=0, step=1, limit=6
    $region2: #{tpu_custom_call.1} parent=1 // loop_pre_header
      _
    $region3: #{tpu_custom_call.1} parent=1 // loop_header
      %s14 = sphi 0, %s18
      %p15 = scmp.ge.s32.totalorder %s14, 6
      %s21 = sphi 0, %s33
      %s22 = sphi 0, %s29
      %s23 = sphi 0, %s21
      %s24 = sphi 0, %s22
      %s25 = sphi 0, %s23
      %s26 = sphi 0, %s24
      %s38 = sphi 0, %s40
      %s41 = sphi 0, %s38
      %s42 = sphi 0, %s41
      %s58 = sphi 0, %s42
      %s66 = sphi 0, %s68
      %s69 = sphi 0, %s66
      %s70 = sphi 0, %s69
      %s86 = sphi 0, %s70
      %s90 = sphi 0, %s90
      %s92 = sphi 0, %s90
      %s93 = sphi 0, %s92
      %s107 = sphi 0, %s93
      %s111 = sphi 0, %s111
      %s113 = sphi 0, %s111
      %s114 = sphi 0, %s113
      %s128 = sphi 0, %s114
      %s132 = sphi 0, %s132
      %s134 = sphi 0, %s132
      %s135 = sphi 0, %s134
      %s149 = sphi 0, %s135
      %s157 = sphi 0, %s159
      %s160 = sphi 0, %s157
      %s161 = sphi 0, %s160
      %s177 = sphi 0, %s161
    $region4: #{tpu_custom_call.1} parent=1 // loop_header_branch
      %17 = sbr.rel (%p15) target = $region8
    $region5: #{tpu_custom_call.1} parent=1 // loop_body
      %s19 = ssub.s32 %s14, 1
      %s20 = ssub.s32 %s14, 2
      %s27 = sadd.s32 1, %s22
      %p28 = scmp.ge.s32.totalorder %s27, 2
      %s29 = scalar_select %p28, 0, %s27
      %s30 = sadd.s32 1, %s21
      %s31 = scalar_select %p28, %s30, %s21
      %p32 = scmp.ge.s32.totalorder %s31, 2
      %s33 = scalar_select %p32, 0, %s31
      %s34 = ssub.s32 %s21, %s33
      %s35 = ssub.s32 %s22, %s29
      %s36 = sor.u32 %s34, %s35
      %p37 = scmp.eq.s32.totalorder %s36, 0
      %s39 = sadd.s32 %s38, 1
      %s40 = scalar_select %p37, %s38, %s39
      %p43 = pneg %p37
      %p44 = scmp.eq.s32.totalorder %s14, 3
      %p45 = por %p43, %p44
      %p46 = scmp.ne.s32.totalorder %s38, %s41
      %p47 = scmp.eq.s32.totalorder %s14, 0
      %p48 = por %p46, %p47
      %p49 = scmp.ne.s32.totalorder %s38, %s41
      %p50 = scmp.eq.s32.totalorder %s19, 3
      %p51 = por %p49, %p50
      %p52 = scmp.ne.s32.totalorder %s41, %s42
      %p53 = scmp.eq.s32.totalorder %s19, 0
      %p54 = por %p52, %p53
      %p55 = scmp.ne.s32.totalorder %s41, %s42
      %p56 = scmp.eq.s32.totalorder %s20, 3
      %p57 = por %p55, %p56
      %p59 = scmp.ne.s32.totalorder %s42, %s58
      %p60 = scmp.eq.s32.totalorder %s20, 0
      %p61 = por %p59, %p60
      %s62 = ssub.s32 %s21, %s33
      %s63 = ssub.s32 %s22, %s29
      %s64 = sor.u32 %s62, %s63
      %p65 = scmp.eq.s32.totalorder %s64, 0
      %s67 = sadd.s32 %s66, 1
      %s68 = scalar_select %p65, %s66, %s67
      %p71 = pneg %p65
      %p72 = scmp.eq.s32.totalorder %s14, 3
      %p73 = por %p71, %p72
      %p74 = scmp.ne.s32.totalorder %s66, %s69
      %p75 = scmp.eq.s32.totalorder %s14, 0
      %p76 = por %p74, %p75
      %p77 = scmp.ne.s32.totalorder %s66, %s69
      %p78 = scmp.eq.s32.totalorder %s19, 3
      %p79 = por %p77, %p78
      %p80 = scmp.ne.s32.totalorder %s69, %s70
      %p81 = scmp.eq.s32.totalorder %s19, 0
      %p82 = por %p80, %p81
      %p83 = scmp.ne.s32.totalorder %s69, %s70
      %p84 = scmp.eq.s32.totalorder %s20, 3
      %p85 = por %p83, %p84
      %p87 = scmp.ne.s32.totalorder %s70, %s86
      %p88 = scmp.eq.s32.totalorder %s20, 0
      %p89 = por %p87, %p88
      %s91 = sadd.s32 %s90, 1
      %p94 = scmp.eq.s32.totalorder %s14, 3
      %p95 = scmp.ne.s32.totalorder %s90, %s92
      %p96 = scmp.eq.s32.totalorder %s14, 0
      %p97 = por %p95, %p96
      %p98 = scmp.ne.s32.totalorder %s90, %s92
      %p99 = scmp.eq.s32.totalorder %s19, 3
      %p100 = por %p98, %p99
      %p101 = scmp.ne.s32.totalorder %s92, %s93
      %p102 = scmp.eq.s32.totalorder %s19, 0
      %p103 = por %p101, %p102
      %p104 = scmp.ne.s32.totalorder %s92, %s93
      %p105 = scmp.eq.s32.totalorder %s20, 3
      %p106 = por %p104, %p105
      %p108 = scmp.ne.s32.totalorder %s93, %s107
      %p109 = scmp.eq.s32.totalorder %s20, 0
      %p110 = por %p108, %p109
      %s112 = sadd.s32 %s111, 1
      %p115 = scmp.eq.s32.totalorder %s14, 3
      %p116 = scmp.ne.s32.totalorder %s111, %s113
      %p117 = scmp.eq.s32.totalorder %s14, 0
      %p118 = por %p116, %p117
      %p119 = scmp.ne.s32.totalorder %s111, %s113
      %p120 = scmp.eq.s32.totalorder %s19, 3
      %p121 = por %p119, %p120
      %p122 = scmp.ne.s32.totalorder %s113, %s114
      %p123 = scmp.eq.s32.totalorder %s19, 0
      %p124 = por %p122, %p123
      %p125 = scmp.ne.s32.totalorder %s113, %s114
      %p126 = scmp.eq.s32.totalorder %s20, 3
      %p127 = por %p125, %p126
      %p129 = scmp.ne.s32.totalorder %s114, %s128
      %p130 = scmp.eq.s32.totalorder %s20, 0
      %p131 = por %p129, %p130
      %s133 = sadd.s32 %s132, 1
      %p136 = scmp.eq.s32.totalorder %s14, 3
      %p137 = scmp.ne.s32.totalorder %s132, %s134
      %p138 = scmp.eq.s32.totalorder %s14, 0
      %p139 = por %p137, %p138
      %p140 = scmp.ne.s32.totalorder %s132, %s134
      %p141 = scmp.eq.s32.totalorder %s19, 3
      %p142 = por %p140, %p141
      %p143 = scmp.ne.s32.totalorder %s134, %s135
      %p144 = scmp.eq.s32.totalorder %s19, 0
      %p145 = por %p143, %p144
      %p146 = scmp.ne.s32.totalorder %s134, %s135
      %p147 = scmp.eq.s32.totalorder %s20, 3
      %p148 = por %p146, %p147
      %p150 = scmp.ne.s32.totalorder %s135, %s149
      %p151 = scmp.eq.s32.totalorder %s20, 0
      %p152 = por %p150, %p151
      %s153 = ssub.s32 %s21, %s33
      %s154 = ssub.s32 %s22, %s29
      %s155 = sor.u32 %s153, %s154
      %p156 = scmp.eq.s32.totalorder %s155, 0
      %s158 = sadd.s32 %s157, 1
      %s159 = scalar_select %p156, %s157, %s158
      %p162 = pneg %p156
      %p163 = scmp.eq.s32.totalorder %s14, 3
      %p164 = por %p162, %p163
      %p165 = scmp.ne.s32.totalorder %s157, %s160
      %p166 = scmp.eq.s32.totalorder %s14, 0
      %p167 = por %p165, %p166
      %p168 = scmp.ne.s32.totalorder %s157, %s160
      %p169 = scmp.eq.s32.totalorder %s19, 3
      %p170 = por %p168, %p169
      %p171 = scmp.ne.s32.totalorder %s160, %s161
      %p172 = scmp.eq.s32.totalorder %s19, 0
      %p173 = por %p171, %p172
      %p174 = scmp.ne.s32.totalorder %s160, %s161
      %p175 = scmp.eq.s32.totalorder %s20, 3
      %p176 = por %p174, %p175
      %p178 = scmp.ne.s32.totalorder %s161, %s177
      %p179 = scmp.eq.s32.totalorder %s20, 0
      %p180 = por %p178, %p179
      %p181 = scmp.le.s32.totalorder 1, %s14
      %p182 = scmp.lt.s32.totalorder %s14, 5
      %p183 = pnand %p181, %p182
      %p184 = pneg %p183
      // Predicated region
      $region9: #{tpu_custom_call.1} parent=5 // pred_check
        _
      $region10: #{tpu_custom_call.1} parent=5 // pred_check_branch
        %186 = sbr.rel (%p183) target = $region12
      $region11: #{tpu_custom_call.1} parent=5 // pred_region
        %s187 = ssub.s32 %s14, 1
        // Predicated region
        $region13: #{tpu_custom_call.1} parent=11 // pred_check
          %p188 = pneg %p103
        $region14: #{tpu_custom_call.1} parent=11 // pred_check_branch
          %190 = sbr.rel (%p188) target = $region16
        $region15: #{tpu_custom_call.1} parent=11 // pred_region
          _
        $region16: #{tpu_custom_call.1} parent=11 // pred_fallthru
          _
        // Predicated region
        $region17: #{tpu_custom_call.1} parent=11 // pred_check
          %p191 = pneg %p124
        $region18: #{tpu_custom_call.1} parent=11 // pred_check_branch
          %193 = sbr.rel (%p191) target = $region20
        $region19: #{tpu_custom_call.1} parent=11 // pred_region
          _
        $region20: #{tpu_custom_call.1} parent=11 // pred_fallthru
          _
        // Predicated region
        $region21: #{tpu_custom_call.1} parent=11 // pred_check
          %p194 = pneg %p145
        $region22: #{tpu_custom_call.1} parent=11 // pred_check_branch
          %196 = sbr.rel (%p194) target = $region24
        $region23: #{tpu_custom_call.1} parent=11 // pred_region
          _
        $region24: #{tpu_custom_call.1} parent=11 // pred_fallthru
          _
      $region12: #{tpu_custom_call.1} parent=5 // pred_fallthru
        _
      %p197 = scmp.lt.s32.totalorder %s14, 4
      // Predicated region
      $region25: #{tpu_custom_call.1} parent=5 // pred_check
        %p198 = pneg %p197
      $region26: #{tpu_custom_call.1} parent=5 // pred_check_branch
        %200 = sbr.rel (%p198) target = $region28
      $region27: #{tpu_custom_call.1} parent=5 // pred_region
        // Predicated region
        $region29: #{tpu_custom_call.1} parent=27 // pred_check
          %p201 = pneg %p48
        $region30: #{tpu_custom_call.1} parent=27 // pred_check_branch
          %203 = sbr.rel (%p201) target = $region32
        $region31: #{tpu_custom_call.1} parent=27 // pred_region
          %s204 = sand.u32 %s38, 1
          %s205 = sand.u32 %s38, 1
          %s206 = smul.addr %s205, 32
          %s207 = scalar_lea.vmem [#allocation3], %s206
          %s208 = smul.addr %s21, 8
          %s209 = sadd.s32 %s22, %s208
          %s210 = smul.addr %s209, 8
          %s211 = scalar_lea.vmem %s0, %s210
          // Predicated region
          $region33: #{tpu_custom_call.1} parent=31 // pred_check
            _
          $region34: #{tpu_custom_call.1} parent=31 // pred_check_branch
            %213 = sbr.rel (0) target = $region36
          $region35: #{tpu_custom_call.1} parent=31 // pred_region
            // Predicated region
            $region37: #{tpu_custom_call.1} parent=35 // pred_check
              _
            $region38: #{tpu_custom_call.1} parent=35 // pred_check_branch
              %215 = sbr.rel (0) target = $region40
            $region39: #{tpu_custom_call.1} parent=35 // pred_region
              // Predicated region
              $region52: #{tpu_custom_call.1} parent=39 // pred_check
                _
              $region53: #{tpu_custom_call.1} parent=39 // pred_check_branch
                %236 = sbr.rel (0) target = $region55
              $region54: #{tpu_custom_call.1} parent=39 // pred_region
                loop: start=0, step=1, limit=1
                $region56: #{tpu_custom_call.1} parent=54 // loop_pre_header
                  _
                $region57: #{tpu_custom_call.1} parent=54 // loop_header
                  %s238 = sphi 0, %s242
                  %p239 = scmp.ge.s32.totalorder %s238, 1
                  %s243 = sphi %s211, %s211
                  %s244 = sphi %s207, %s207
                $region58: #{tpu_custom_call.1} parent=54 // loop_header_branch
                  %241 = sbr.rel (%p239) target = $region62
                $region59: #{tpu_custom_call.1} parent=54 // loop_body
                  %v245 = vld [vmem:[%s243] sm:$0xff]
                  %246 = vst [vmem:[%s244] sm:$0xff] %v245
                  %v247 = vld [vmem:[%s243 + $0x10] sm:$0xff]
                  %248 = vst [vmem:[%s244 + $0x8] sm:$0xff] %v247
                  %v249 = vld [vmem:[%s243 + $0x20] sm:$0xff]
                  %250 = vst [vmem:[%s244 + $0x10] sm:$0xff] %v249
                  %v251 = vld [vmem:[%s243 + $0x30] sm:$0xff]
                  %252 = vst [vmem:[%s244 + $0x18] sm:$0xff] %v251
                $region60: #{tpu_custom_call.1} parent=54 // loop_footer
                  %s242 = sadd.s32 1, %s238
                $region61: #{tpu_custom_call.1} parent=54 // loop_footer_branch
                  %237 = sbr.rel target = $region57
                $region62: #{tpu_custom_call.1} parent=54 // loop_exit
                  _
              $region55: #{tpu_custom_call.1} parent=39 // pred_fallthru
                _
              // Predicated region
              $region63: #{tpu_custom_call.1} parent=39 // pred_check
                _
              $region64: #{tpu_custom_call.1} parent=39 // pred_check_branch
                %254 = sbr.rel target = $region66
              $region65: #{tpu_custom_call.1} parent=39 // pred_region
                _
              $region66: #{tpu_custom_call.1} parent=39 // pred_fallthru
                _
            $region40: #{tpu_custom_call.1} parent=35 // pred_fallthru
              _
            // Predicated region
            $region41: #{tpu_custom_call.1} parent=35 // pred_check
              _
            $region42: #{tpu_custom_call.1} parent=35 // pred_check_branch
              %217 = sbr.rel target = $region44
            $region43: #{tpu_custom_call.1} parent=35 // pred_region
              loop: start=0, step=1, limit=1
              $region45: #{tpu_custom_call.1} parent=43 // loop_pre_header
                _
              $region46: #{tpu_custom_call.1} parent=43 // loop_header
                %s220 = sphi 0, %s224
                %p221 = scmp.ge.s32.totalorder %s220, 1
                %s225 = sphi %s211, %s211
                %s226 = sphi %s207, %s207
              $region47: #{tpu_custom_call.1} parent=43 // loop_header_branch
                %223 = sbr.rel (%p221) target = $region51
              $region48: #{tpu_custom_call.1} parent=43 // loop_body
                %v227 = vld [vmem:[%s225] sm:$0xff]
                %228 = vst [vmem:[%s226] sm:$0xff] %v227
                %v229 = vld [vmem:[%s225 + $0x10] sm:$0xff]
                %230 = vst [vmem:[%s226 + $0x8] sm:$0xff] %v229
                %v231 = vld [vmem:[%s225 + $0x20] sm:$0xff]
                %232 = vst [vmem:[%s226 + $0x10] sm:$0xff] %v231
                %v233 = vld [vmem:[%s225 + $0x30] sm:$0xff]
                %234 = vst [vmem:[%s226 + $0x18] sm:$0xff] %v233
              $region49: #{tpu_custom_call.1} parent=43 // loop_footer
                %s224 = sadd.s32 1, %s220
              $region50: #{tpu_custom_call.1} parent=43 // loop_footer_branch
                %219 = sbr.rel target = $region46
              $region51: #{tpu_custom_call.1} parent=43 // loop_exit
                _
            $region44: #{tpu_custom_call.1} parent=35 // pred_fallthru
              _
          $region36: #{tpu_custom_call.1} parent=31 // pred_fallthru
            _
          %255 = vnop
        $region32: #{tpu_custom_call.1} parent=27 // pred_fallthru
          _
        // Predicated region
        $region67: #{tpu_custom_call.1} parent=27 // pred_check
          %p256 = pneg %p76
        $region68: #{tpu_custom_call.1} parent=27 // pred_check_branch
          %258 = sbr.rel (%p256) target = $region70
        $region69: #{tpu_custom_call.1} parent=27 // pred_region
          %p259 = scmp.lt.s32.totalorder %s21, 1
          %s260 = scalar_select %p259, %s21, 1
          %p261 = scmp.lt.s32.totalorder %s22, 1
          %s262 = scalar_select %p261, %s22, 1
          %s263 = smul.addr %s260, 2
          %s264 = sadd.s32 %s262, %s263
          %s265 = smul.addr %s264, 4
          %s266 = scalar_lea.vmem %s1, %s265
        $region70: #{tpu_custom_call.1} parent=27 // pred_fallthru
          _
      $region28: #{tpu_custom_call.1} parent=5 // pred_fallthru
        _
      %p267 = scmp.le.s32.totalorder 1, %s14
      %p268 = scmp.lt.s32.totalorder %s14, 5
      %p269 = pnand %p267, %p268
      %p270 = pneg %p269
      // Predicated region
      $region71: #{tpu_custom_call.1} parent=5 // pred_check
        _
      $region72: #{tpu_custom_call.1} parent=5 // pred_check_branch
        %272 = sbr.rel (%p269) target = $region74
      $region73: #{tpu_custom_call.1} parent=5 // pred_region
        %s273 = ssub.s32 %s14, 1
        %s274 = sand.u32 %s41, 1
        %s275 = sand.u32 %s41, 1
        %s276 = smul.addr %s275, 32
        %s277 = scalar_lea.vmem [#allocation3], %s276
        // Predicated region
        $region75: #{tpu_custom_call.1} parent=73 // pred_check
          %p278 = pneg %p54
        $region76: #{tpu_custom_call.1} parent=73 // pred_check_branch
          %280 = sbr.rel (%p278) target = $region78
        $region77: #{tpu_custom_call.1} parent=73 // pred_region
          _
        $region78: #{tpu_custom_call.1} parent=73 // pred_fallthru
          _
        %s281 = sand.u32 %s41, 1
        %s282 = sand.u32 %s41, 1
        %s283 = smul.addr %s282, 32
        %s284 = scalar_lea.vmem [#allocation3], %s283
        %p285 = pneg %p54
        %p286 = pneg %p51
        %p287 = scmp.lt.s32.totalorder %s23, 1
        %s288 = scalar_select %p287, %s23, 1
        %p289 = scmp.lt.s32.totalorder %s24, 1
        %s290 = scalar_select %p289, %s24, 1
        %s291 = smul.addr %s288, 2
        %s292 = sadd.s32 %s290, %s291
        %s293 = smul.addr %s292, 4
        %s294 = scalar_lea.vmem %s1, %s293
        %p295 = pneg %p82
        %p296 = pneg %p79
        %p297 = pneg %p103
        %p298 = pneg %p100
        %p299 = pneg %p124
        %p300 = pneg %p121
        %p301 = pneg %p145
        %p302 = pneg %p142
        %p303 = pneg %p173
        %p304 = pneg %p170
        %s305 = sand.u32 %s160, 1
        %s306 = scalar_lea.sflag [#allocation5], %s305
        %s307 = sand.u32 %s160, 1
        %s308 = smul.addr %s307, 4
        %s309 = scalar_lea.vmem [#allocation4], %s308
        %p310 = scmp.lt.s32.totalorder %s23, 1
        %s311 = scalar_select %p310, %s23, 1
        %p312 = scmp.lt.s32.totalorder %s24, 1
        %s313 = scalar_select %p312, %s24, 1
        %s314 = smul.addr %s311, 2
        %s315 = sadd.s32 %s313, %s314
        %s316 = smul.addr %s315, 4
        %s317 = scalar_lea.vmem %s1, %s316
        %v318 = vld [vmem:[%s3] sm:$0xf]
        %v319 = vld [vmem:[%s317] sm:$0xf]
        %v320 = vld [vmem:[%s4] sm:$0xf]
        %322 = vset.pattern.permute.xlu0 0
        %323 = vperm.xlu0 %322, %v320
        %v324 = vpop.permute.xlu0 %323
        %vm326 = vcmask 31744
        %v328 = vsel %vm326, %v318, 0
        %vm330 = vcmask 1043456
        %v332 = vsel %vm330, %v319, 0
        %334 = vmatprep.subr.mxu0 0.0
        %335 = vmatpush1.msra.mxu0 %v332
        %336 = vmatprep.subr.mxu0 0.0
        %337 = vmatpush1.msra.mxu0 0.0
        %338 = vmatprep.subr.mxu0 0.0
        %339 = vmatpush1.msra.mxu0 0.0
        %340 = vmatprep.subr.mxu0 0.0
        %341 = vmatpush1.msra.mxu0 0.0
        %342 = vmatprep.subr.mxu0 0.0
        %343 = vmatpush1.msra.mxu0 0.0
        %344 = vmatprep.subr.mxu0 0.0
        %345 = vmatpush1.msra.mxu0 0.0
        %346 = vmatprep.subr.mxu0 0.0
        %347 = vmatpush1.msra.mxu0 0.0
        %348 = vmatprep.subr.mxu0 0.0
        %349 = vmatpush1.msra.mxu0 0.0
        %350 = vmatprep.subr.mxu0 0.0
        %351 = vmatpush1.msra.mxu0 0.0
        %352 = vmatprep.subr.mxu0 0.0
        %353 = vmatpush1.msra.mxu0 0.0
        %354 = vmatprep.subr.mxu0 0.0
        %355 = vmatpush1.msra.mxu0 0.0
        %356 = vmatprep.subr.mxu0 0.0
        %357 = vmatpush1.msra.mxu0 0.0
        %358 = vmatprep.subr.mxu0 0.0
        %359 = vmatpush1.msra.mxu0 0.0
        %360 = vmatprep.subr.mxu0 0.0
        %361 = vmatpush1.msra.mxu0 0.0
        %362 = vmatprep.subr.mxu0 0.0
        %363 = vmatpush1.msra.mxu0 0.0
        %364 = vmatprep.subr.mxu0 0.0
        %365 = vmatpush1.msra.mxu0 0.0
        %366 = vmatprep.subr.mxu0 0.0
        %367 = vmatpush1.msra.mxu0 0.0
        %368 = vmatprep.subr.mxu0 0.0
        %369 = vmatpush1.msra.mxu0 0.0
        %370 = vmatprep.subr.mxu0 0.0
        %371 = vmatpush1.msra.mxu0 0.0
        %372 = vmatprep.subr.mxu0 0.0
        %373 = vmatpush1.msra.mxu0 0.0
        %374 = vmatprep.subr.mxu0 0.0
        %375 = vmatpush1.msra.mxu0 0.0
        %376 = vmatprep.subr.mxu0 0.0
        %377 = vmatpush1.msra.mxu0 0.0
        %378 = vmatprep.subr.mxu0 0.0
        %379 = vmatpush1.msra.mxu0 0.0
        %380 = vmatprep.subr.mxu0 0.0
        %381 = vmatpush1.msra.mxu0 0.0
        %382 = vmatprep.subr.mxu0 0.0
        %383 = vmatpush1.msra.mxu0 0.0
        %384 = vmatprep.subr.mxu0 0.0
        %385 = vmatpush1.msra.mxu0 0.0
        %386 = vmatprep.subr.mxu0 0.0
        %387 = vmatpush1.msra.mxu0 0.0
        %388 = vmatprep.subr.mxu0 0.0
        %389 = vmatpush1.msra.mxu0 0.0
        %390 = vmatprep.subr.mxu0 0.0
        %391 = vmatpush1.msra.mxu0 0.0
        %392 = vmatprep.subr.mxu0 0.0
        %393 = vmatpush1.msra.mxu0 0.0
        %394 = vmatprep.subr.mxu0 0.0
        %395 = vmatpush1.msra.mxu0 0.0
        %396 = vmatprep.subr.mxu0 0.0
        %397 = vmatpush1.msra.mxu0 0.0
        %398 = vmatprep.mubr.f32.mxu0 0.0
        %399 = vmatmul.mubr.f32.gmra.mrb[0].mxu0 %v328
        %v400 = vpop.f32.mrb[0].mxu0
        %v401 = vadd.f32 %v324, %v400
        %v402 = vpop.f32.mrb[0].mxu0
        %403 = vdwg.mxu0
        %v404 = vld [vmem:[%s277] sm:$0xff]
        %v405 = vld [vmem:[%s277 + $0x8] sm:$0xff]
        %v406 = vld [vmem:[%s277 + $0x10] sm:$0xff]
        %v407 = vld [vmem:[%s277 + $0x18] sm:$0xff]
        %v408 = vld [vmem:[%s2] sm:$0xff]
        %vm409 = vcmask 64512
        %v411 = vsel %vm409, %v404, 0
        %v414 = vsel %vm409, %v405, 0
        %v417 = vsel %vm409, %v406, 0
        %v420 = vsel %vm409, %v407, 0
        %422 = vmatprep.subr.mxu0 0.0
        %423 = vmatpush1.msra.mxu0 %v408
        %424 = vmatprep.subr.mxu0 0.0
        %425 = vmatpush1.msra.mxu0 0.0
        %426 = vmatprep.subr.mxu0 0.0
        %427 = vmatpush1.msra.mxu0 0.0
        %428 = vmatprep.subr.mxu0 0.0
        %429 = vmatpush1.msra.mxu0 0.0
        %430 = vmatprep.subr.mxu0 0.0
        %431 = vmatpush1.msra.mxu0 0.0
        %432 = vmatprep.subr.mxu0 0.0
        %433 = vmatpush1.msra.mxu0 0.0
        %434 = vmatprep.subr.mxu0 0.0
        %435 = vmatpush1.msra.mxu0 0.0
        %436 = vmatprep.subr.mxu0 0.0
        %437 = vmatpush1.msra.mxu0 0.0
        %438 = vmatprep.subr.mxu0 0.0
        %439 = vmatpush1.msra.mxu0 0.0
        %440 = vmatprep.subr.mxu0 0.0
        %441 = vmatpush1.msra.mxu0 0.0
        %442 = vmatprep.subr.mxu0 0.0
        %443 = vmatpush1.msra.mxu0 0.0
        %444 = vmatprep.subr.mxu0 0.0
        %445 = vmatpush1.msra.mxu0 0.0
        %446 = vmatprep.subr.mxu0 0.0
        %447 = vmatpush1.msra.mxu0 0.0
        %448 = vmatprep.subr.mxu0 0.0
        %449 = vmatpush1.msra.mxu0 0.0
        %450 = vmatprep.subr.mxu0 0.0
        %451 = vmatpush1.msra.mxu0 0.0
        %452 = vmatprep.subr.mxu0 0.0
        %453 = vmatpush1.msra.mxu0 0.0
        %454 = vmatprep.subr.mxu0 0.0
        %455 = vmatpush1.msra.mxu0 0.0
        %456 = vmatprep.subr.mxu0 0.0
        %457 = vmatpush1.msra.mxu0 0.0
        %458 = vmatprep.subr.mxu0 0.0
        %459 = vmatpush1.msra.mxu0 0.0
        %460 = vmatprep.subr.mxu0 0.0
        %461 = vmatpush1.msra.mxu0 0.0
        %462 = vmatprep.subr.mxu0 0.0
        %463 = vmatpush1.msra.mxu0 0.0
        %464 = vmatprep.subr.mxu0 0.0
        %465 = vmatpush1.msra.mxu0 0.0
        %466 = vmatprep.subr.mxu0 0.0
        %467 = vmatpush1.msra.mxu0 0.0
        %468 = vmatprep.subr.mxu0 0.0
        %469 = vmatpush1.msra.mxu0 0.0
        %470 = vmatprep.subr.mxu0 0.0
        %471 = vmatpush1.msra.mxu0 0.0
        %472 = vmatprep.subr.mxu0 0.0
        %473 = vmatpush1.msra.mxu0 0.0
        %474 = vmatprep.subr.mxu0 0.0
        %475 = vmatpush1.msra.mxu0 0.0
        %476 = vmatprep.subr.mxu0 0.0
        %477 = vmatpush1.msra.mxu0 0.0
        %478 = vmatprep.subr.mxu0 0.0
        %479 = vmatpush1.msra.mxu0 0.0
        %480 = vmatprep.subr.mxu0 0.0
        %481 = vmatpush1.msra.mxu0 0.0
        %482 = vmatprep.subr.mxu0 0.0
        %483 = vmatpush1.msra.mxu0 0.0
        %484 = vmatprep.subr.mxu0 0.0
        %485 = vmatpush1.msra.mxu0 0.0
        %486 = vmatprep.mubr.f32.mxu0 0.0
        %487 = vmatmul.mubr.f32.gmra.mrb[0].mxu0 %v411
        %v488 = vpop.f32.mrb[0].mxu0
        %v489 = vadd.f32 0.0, %v488
        %v490 = vpop.f32.mrb[0].mxu0
        %491 = vmatprep.mubr.f32.mxu0 0.0
        %492 = vmatmul.mubr.f32.gmra.mrb[0].mxu0 %v414
        %v493 = vpop.f32.mrb[0].mxu0
        %v494 = vadd.f32 0.0, %v493
        %v495 = vpop.f32.mrb[0].mxu0
        %496 = vmatprep.mubr.f32.mxu0 0.0
        %497 = vmatmul.mubr.f32.gmra.mrb[0].mxu0 %v417
        %v498 = vpop.f32.mrb[0].mxu0
        %v499 = vadd.f32 0.0, %v498
        %v500 = vpop.f32.mrb[0].mxu0
        %501 = vmatprep.mubr.f32.mxu0 0.0
        %502 = vmatmul.mubr.f32.gmra.mrb[0].mxu0 %v420
        %v503 = vpop.f32.mrb[0].mxu0
        %v504 = vadd.f32 0.0, %v503
        %v505 = vpop.f32.mrb[0].mxu0
        %506 = vdwg.mxu0
        %vm507 = vcmask 130048
        %508 = vst.msk [vmem:[#allocation2] sm:$0xff] %vm507, %v489
        %509 = vst.msk [vmem:[#allocation2 + $0x8] sm:$0xff] %vm507, %v494
        %510 = vst.msk [vmem:[#allocation2 + $0x10] sm:$0xff] %vm507, %v499
        %511 = vst.msk [vmem:[#allocation2 + $0x18] sm:$0xff] %vm507, %v504
        %v512 = vld [vmem:[#allocation2] sm:$0x1]
        %v513 = vld [vmem:[#allocation2 + $0x8] sm:$0x1]
        %v514 = vld [vmem:[#allocation2 + $0x10] sm:$0x1]
        %v515 = vld [vmem:[#allocation2 + $0x18] sm:$0x1]
        %v520 = vrot.slane %v513, 7
        %vm521 = vcmask 1041409
        %v522 = vsel %vm521, %v520, %v512
        %v523 = vrot.slane %v514, 6
        %vm524 = vcmask 1042434
        %v525 = vsel %vm524, %v523, %v522
        %v526 = vrot.slane %v515, 5
        %vm527 = vcmask 1043459
        %v528 = vsel %vm527, %v526, %v525
        %v530 = vadd.f32 %v401, %v528
        %vm531 = vcmask 125952
        %532 = vst.msk [vmem:[%s309] sm:$0xf] %vm531, %v530
        %v533 = vld [vmem:[#allocation2 + $0x1] sm:$0x1]
        %v534 = vld [vmem:[#allocation2 + $0x9] sm:$0x1]
        %v535 = vld [vmem:[#allocation2 + $0x11] sm:$0x1]
        %v536 = vld [vmem:[#allocation2 + $0x19] sm:$0x1]
        %v541 = vrot.slane %v534, 7
        %v542 = vsel %vm521, %v541, %v533
        %v543 = vrot.slane %v535, 6
        %v544 = vsel %vm524, %v543, %v542
        %v545 = vrot.slane %v536, 5
        %v546 = vsel %vm527, %v545, %v544
        %547 = vrot.lane.b32.xlu0 %v546, 16
        %v548 = vpop.permute.xlu0 %547
        %v550 = vadd.f32 %v401, %v548
        %vm551 = vcmask 257152
        %552 = vst.msk [vmem:[%s309] sm:$0xf] %vm551, %v550
        %v553 = vld [vmem:[#allocation2 + $0x2] sm:$0x1]
        %v554 = vld [vmem:[#allocation2 + $0xa] sm:$0x1]
        %v555 = vld [vmem:[#allocation2 + $0x12] sm:$0x1]
        %v556 = vld [vmem:[#allocation2 + $0x1a] sm:$0x1]
        %v561 = vrot.slane %v554, 7
        %v562 = vsel %vm521, %v561, %v553
        %v563 = vrot.slane %v555, 6
        %v564 = vsel %vm524, %v563, %v562
        %v565 = vrot.slane %v556, 5
        %v566 = vsel %vm527, %v565, %v564
        %567 = vrot.lane.b32.xlu0 %v566, 32
        %v568 = vpop.permute.xlu0 %567
        %v570 = vadd.f32 %v401, %v568
        %vm571 = vcmask 388352
        %572 = vst.msk [vmem:[%s309] sm:$0xf] %vm571, %v570
        %v573 = vld [vmem:[#allocation2 + $0x3] sm:$0x1]
        %v574 = vld [vmem:[#allocation2 + $0xb] sm:$0x1]
        %v575 = vld [vmem:[#allocation2 + $0x13] sm:$0x1]
        %v576 = vld [vmem:[#allocation2 + $0x1b] sm:$0x1]
        %v581 = vrot.slane %v574, 7
        %v582 = vsel %vm521, %v581, %v573
        %v583 = vrot.slane %v575, 6
        %v584 = vsel %vm524, %v583, %v582
        %v585 = vrot.slane %v576, 5
        %v586 = vsel %vm527, %v585, %v584
        %587 = vrot.lane.b32.xlu0 %v586, 48
        %v588 = vpop.permute.xlu0 %587
        %v590 = vadd.f32 %v401, %v588
        %vm591 = vcmask 519552
        %592 = vst.msk [vmem:[%s309] sm:$0xf] %vm591, %v590
        %v593 = vld [vmem:[#allocation2 + $0x4] sm:$0x1]
        %v594 = vld [vmem:[#allocation2 + $0xc] sm:$0x1]
        %v595 = vld [vmem:[#allocation2 + $0x14] sm:$0x1]
        %v596 = vld [vmem:[#allocation2 + $0x1c] sm:$0x1]
        %v601 = vrot.slane %v594, 7
        %v602 = vsel %vm521, %v601, %v593
        %v603 = vrot.slane %v595, 6
        %v604 = vsel %vm524, %v603, %v602
        %v605 = vrot.slane %v596, 5
        %v606 = vsel %vm527, %v605, %v604
        %607 = vrot.lane.b32.xlu0 %v606, 64
        %v608 = vpop.permute.xlu0 %607
        %v610 = vadd.f32 %v401, %v608
        %vm611 = vcmask 650752
        %612 = vst.msk [vmem:[%s309] sm:$0xf] %vm611, %v610
        %v613 = vld [vmem:[#allocation2 + $0x5] sm:$0x1]
        %v614 = vld [vmem:[#allocation2 + $0xd] sm:$0x1]
        %v615 = vld [vmem:[#allocation2 + $0x15] sm:$0x1]
        %v616 = vld [vmem:[#allocation2 + $0x1d] sm:$0x1]
        %v621 = vrot.slane %v614, 7
        %v622 = vsel %vm521, %v621, %v613
        %v623 = vrot.slane %v615, 6
        %v624 = vsel %vm524, %v623, %v622
        %v625 = vrot.slane %v616, 5
        %v626 = vsel %vm527, %v625, %v624
        %627 = vrot.lane.b32.xlu0 %v626, 80
        %v628 = vpop.permute.xlu0 %627
        %v630 = vadd.f32 %v401, %v628
        %vm631 = vcmask 781952
        %632 = vst.msk [vmem:[%s309] sm:$0xf] %vm631, %v630
        %v633 = vld [vmem:[#allocation2 + $0x6] sm:$0x1]
        %v634 = vld [vmem:[#allocation2 + $0xe] sm:$0x1]
        %v635 = vld [vmem:[#allocation2 + $0x16] sm:$0x1]
        %v636 = vld [vmem:[#allocation2 + $0x1e] sm:$0x1]
        %v641 = vrot.slane %v634, 7
        %v642 = vsel %vm521, %v641, %v633
        %v643 = vrot.slane %v635, 6
        %v644 = vsel %vm524, %v643, %v642
        %v645 = vrot.slane %v636, 5
        %v646 = vsel %vm527, %v645, %v644
        %647 = vrot.lane.b32.xlu0 %v646, 96
        %v648 = vpop.permute.xlu0 %647
        %v650 = vadd.f32 %v401, %v648
        %vm651 = vcmask 913152
        %652 = vst.msk [vmem:[%s309] sm:$0xf] %vm651, %v650
        %v653 = vld [vmem:[#allocation2 + $0x7] sm:$0x1]
        %v654 = vld [vmem:[#allocation2 + $0xf] sm:$0x1]
        %v655 = vld [vmem:[#allocation2 + $0x17] sm:$0x1]
        %v656 = vld [vmem:[#allocation2 + $0x1f] sm:$0x1]
        %v661 = vrot.slane %v654, 7
        %v662 = vsel %vm521, %v661, %v653
        %v663 = vrot.slane %v655, 6
        %v664 = vsel %vm524, %v663, %v662
        %v665 = vrot.slane %v656, 5
        %v666 = vsel %vm527, %v665, %v664
        %667 = vrot.lane.b32.xlu0 %v666, 112
        %v668 = vpop.permute.xlu0 %667
        %v670 = vadd.f32 %v401, %v668
        %vm671 = vcmask 1044352
        %672 = vst.msk [vmem:[%s309] sm:$0xf] %vm671, %v670
        %s673 = sand.u32 %s160, 1
        %s674 = scalar_lea.sflag [#allocation5], %s673
        %s675 = sand.u32 %s160, 1
        %s676 = smul.addr %s675, 4
        %s677 = scalar_lea.vmem [#allocation4], %s676
        // Predicated region
        $region79: #{tpu_custom_call.1} parent=73 // pred_check
          %p678 = pneg %p170
        $region80: #{tpu_custom_call.1} parent=73 // pred_check_branch
          %680 = sbr.rel (%p678) target = $region82
        $region81: #{tpu_custom_call.1} parent=73 // pred_region
          %s682 = ssub.s32 64, 64
          %683 = vsyncadd %s674, %s682
          %s684 = smul.addr %s23, 2
          %s685 = sadd.s32 %s24, %s684
          %s686 = smul.addr %s685, 64
          %s687 = scalar_lea.hbm %s5, %s686
          %s689 = sshll.u32 %s677, 4
          %s690 = int_to_ptr.vmem [resolvable:$true] %s689
          %692 = dma.vmem_to_hbm [thread:$0]  %s690, 64, %s687, %s674
        $region82: #{tpu_custom_call.1} parent=73 // pred_fallthru
          _
      $region74: #{tpu_custom_call.1} parent=5 // pred_fallthru
        _
      %p693 = scmp.le.s32.totalorder 2, %s14
      // Predicated region
      $region83: #{tpu_custom_call.1} parent=5 // pred_check
        %p694 = pneg %p693
      $region84: #{tpu_custom_call.1} parent=5 // pred_check_branch
        %696 = sbr.rel (%p694) target = $region86
      $region85: #{tpu_custom_call.1} parent=5 // pred_region
        %s697 = ssub.s32 %s14, 2
        // Predicated region
        $region87: #{tpu_custom_call.1} parent=85 // pred_check
          %p698 = pneg %p176
        $region88: #{tpu_custom_call.1} parent=85 // pred_check_branch
          %700 = sbr.rel (%p698) target = $region90
        $region89: #{tpu_custom_call.1} parent=85 // pred_region
          %s701 = sand.u32 %s161, 1
          %s702 = scalar_lea.sflag [#allocation5], %s701
          %s703 = sand.u32 %s161, 1
          %s704 = smul.addr %s703, 4
          %s705 = scalar_lea.vmem [#allocation4], %s704
          %706 = dma.done %s702, 64
        $region90: #{tpu_custom_call.1} parent=85 // pred_fallthru
          _
      $region86: #{tpu_custom_call.1} parent=5 // pred_fallthru
        _
    $region6: #{tpu_custom_call.1} parent=1 // loop_footer
      %s18 = sadd.s32 1, %s14
    $region7: #{tpu_custom_call.1} parent=1 // loop_footer_branch
      %13 = sbr.rel target = $region3
    $region8: #{tpu_custom_call.1} parent=1 // loop_exit
      _
    %707 = vsyncpa [#allocation5], 1
    %s708 = scalar_lea.sflag [#allocation5], 1
    %709 = vsyncpa %s708, 1

</llo_original>
